<compile_context>
chip_gen: v6e
topology: v6e:2x2x1
jax: 0.10.0
libtpu: 0.0.40
codegen_flags: <defaults>
</compile_context>

<pallas_src>
import functools

import jax
import jax.numpy as jnp
from jax.experimental import pallas as pl
from jax.experimental.pallas import tpu as pltpu


def _round_up(x, m):
    return ((x + m - 1) // m) * m


def _linear_sigmoid_kernel(x_ref, w_ref, b_ref, o_ref):
    # x_ref: (tm, tk) compute dtype, w_ref: (tk, tn) compute dtype,
    # b_ref: (1, tn) f32, o_ref: (tm, tn) f32 (resident across the k axis).
    k = pl.program_id(2)

    @pl.when(k == 0)
    def _init():
        o_ref[...] = jnp.zeros_like(o_ref)

    o_ref[...] += jnp.dot(x_ref[...], w_ref[...], preferred_element_type=jnp.float32)

    @pl.when(k == pl.num_programs(2) - 1)
    def _finalize():
        z = o_ref[...] + b_ref[...]
        # Exact sigmoid: exp on the EUP, one exact divide per output tile (epilogue only).
        o_ref[...] = 1.0 / (1.0 + jnp.exp(-z))


@functools.partial(jax.jit, static_argnames=("tm", "tn", "tk", "out_dim", "compute_dtype"))
def _forward(x, w_t, b, *, tm, tn, tk, out_dim, compute_dtype):
    B, D = x.shape
    Dp, Op = w_t.shape
    Bp = _round_up(B, tm)

    xc = x.astype(compute_dtype)
    if B == Bp and D == Dp:
        xp = xc
    else:
        xp = jnp.pad(xc, ((0, Bp - B), (0, Dp - D)))

    out = pl.pallas_call(
        _linear_sigmoid_kernel,
        out_shape=jax.ShapeDtypeStruct((Bp, Op), jnp.float32),
        grid_spec=pltpu.PrefetchScalarGridSpec(
            num_scalar_prefetch=0,
            grid=(Bp // tm, Op // tn, Dp // tk),
            in_specs=[
                pl.BlockSpec((tm, tk), lambda i, j, k: (i, k)),   # x tile
                pl.BlockSpec((tk, tn), lambda i, j, k: (k, j)),   # W^T tile (D-major)
                pl.BlockSpec((1, tn), lambda i, j, k: (0, j)),    # bias tile
            ],
            out_specs=pl.BlockSpec((tm, tn), lambda i, j, k: (i, j)),
        ),
        compiler_params=pltpu.CompilerParams(
            dimension_semantics=("parallel", "parallel", "arbitrary"),
        ),
    )(xp, w_t, b)

    return out[:B, :out_dim]


class LinearClassifierPallas:
    """sigmoid(x @ W^T + b) matching nn.Linear(input_dim, output_dim) + nn.Sigmoid.

    Weight/bias are padded, transposed and cast exactly once at construction.
    compute_dtype=jnp.bfloat16 feeds the MXU its native dtype; accumulation is f32.
    """

    def __init__(self, weight, bias, compute_dtype=jnp.bfloat16):
        O, D = weight.shape
        self.out_dim = O
        self.in_dim = D
        self.compute_dtype = compute_dtype

        # Shape-adaptive tile choice for the static (D, O) dims.
        Dp = _round_up(D, 128)
        self.tk = Dp if Dp <= 512 else 256
        Dp = _round_up(Dp, self.tk)

        Op = _round_up(O, 128)
        self.tn = Op if Op <= 512 else 256   # collapse the j axis for classifier-sized O
        Op = _round_up(Op, self.tn)

        self.Dp, self.Op = Dp, Op

        # One-time param prep (outside the jitted per-call path): transpose to (D, O),
        # cast to the compute dtype, zero-pad to tile multiples.
        w_t = jnp.pad(weight.astype(compute_dtype).T, ((0, Dp - D), (0, Op - O)))
        b = jnp.pad(bias.astype(jnp.float32), (0, Op - O)).reshape(1, Op)
        self.w_t = w_t
        self.b = b

    def _choose_tm(self, B):
        Bp = _round_up(B, 8)
        if Bp > 512:
            return 512
        tm = Bp
        # If the output-column axis is a single block, split the batch axis into two
        # blocks (when divisible) so both TensorCores get work on v7x megacore.
        if self.Op == self.tn and Bp >= 16 and Bp % 16 == 0:
            tm = Bp // 2
        return tm

    def __call__(self, x):
        tm = self._choose_tm(x.shape[0])
        return _forward(
            x, self.w_t, self.b,
            tm=tm, tn=self.tn, tk=self.tk,
            out_dim=self.out_dim, compute_dtype=self.compute_dtype,
        )


if __name__ == "__main__":
    input_dim = 2
    output_dim = 1
    batch = 8

    key = jax.random.PRNGKey(0)
    kx, kw, kb = jax.random.split(key, 3)

    # Deterministic parameter init mimicking nn.Linear: U(-1/sqrt(in), 1/sqrt(in))
    bound = 1.0 / (input_dim ** 0.5)
    weight = jax.random.uniform(kw, (output_dim, input_dim), jnp.float32, -bound, bound)
    bias = jax.random.uniform(kb, (output_dim,), jnp.float32, -bound, bound)
    x = jax.random.normal(kx, (batch, input_dim), jnp.float32)

    model = LinearClassifierPallas(weight, bias, compute_dtype=jnp.bfloat16)
    out = jax.block_until_ready(model(x))
    assert out.shape == (batch, output_dim)

    # Tight reference against the same bf16-quantized operands the MXU sees
    # (f32 accumulation + exact sigmoid epilogue => should match closely).
    xq = x.astype(jnp.bfloat16).astype(jnp.float32)
    wq = weight.astype(jnp.bfloat16).astype(jnp.float32)
    ref_q = jax.nn.sigmoid(xq @ wq.T + bias)
    assert jnp.allclose(out, ref_q, atol=1e-4, rtol=1e-4), float(jnp.max(jnp.abs(out - ref_q)))

    # Loose check against the full-f32 reference (documents the bf16-input tolerance).
    ref_f32 = jax.nn.sigmoid(x @ weight.T + bias)
    assert jnp.allclose(out, ref_f32, atol=5e-3, rtol=5e-3), float(jnp.max(jnp.abs(out - ref_f32)))

    print("KERNEL_OK")
</pallas_src>

<mosaic_0001>
module attributes {stable_mosaic.version = 11 : i64} {
  func.func @_linear_sigmoid_kernel(%arg0: i32, %arg1: i32, %arg2: i32, %arg3: memref<8x128xbf16, #tpu.memory_space<vmem>>, %arg4: memref<128x128xbf16, #tpu.memory_space<vmem>>, %arg5: memref<1x128xf32, #tpu.memory_space<vmem>>, %arg6: memref<8x128xf32, #tpu.memory_space<vmem>>) attributes {dimension_semantics = [#tpu.dimension_semantics<parallel>, #tpu.dimension_semantics<parallel>, #tpu.dimension_semantics<arbitrary>], iteration_bounds = array<i64: 1, 1, 1>, scalar_prefetch = 0 : i64, scratch_operands = 0 : i64, tpu.core_type = #tpu.core_type<tc>, window_params = [{transform_indices = @transform_0, window_bounds = array<i64: 8, 128>}, {transform_indices = @transform_1, window_bounds = array<i64: 128, 128>}, {transform_indices = @transform_2, window_bounds = array<i64: 1, 128>}, {transform_indices = @transform_3, window_bounds = array<i64: 8, 128>}]} {
    %c0_i32 = arith.constant 0 : i32
    %0 = arith.cmpi eq, %arg2, %c0_i32 : i32
    %1 = arith.extui %0 : i1 to i32
    %c0_i32_0 = arith.constant 0 : i32
    %2 = arith.cmpi ne, %1, %c0_i32_0 : i32
    scf.if %2 {
      %cst_10 = arith.constant 0.000000e+00 : f32
      %12 = vector.broadcast %cst_10 : f32 to vector<8x128xf32>
      %c0_11 = arith.constant 0 : index
      %c0_12 = arith.constant 0 : index
      %13 = vector.load %arg6[%c0_11, %c0_12] : memref<8x128xf32, #tpu.memory_space<vmem>>, vector<8x128xf32>
      tpu.vector_store %arg6[%c0_11, %c0_12], %12 {strides = array<i32>} : memref<8x128xf32, #tpu.memory_space<vmem>>, vector<8x128xf32>,
    } else {
    }
    %c0 = arith.constant 0 : index
    %c0_1 = arith.constant 0 : index
    %3 = vector.load %arg6[%c0, %c0_1] : memref<8x128xf32, #tpu.memory_space<vmem>>, vector<8x128xf32>
    %c0_2 = arith.constant 0 : index
    %c0_3 = arith.constant 0 : index
    %4 = vector.load %arg3[%c0_2, %c0_3] : memref<8x128xbf16, #tpu.memory_space<vmem>>, vector<8x128xbf16>
    %c0_4 = arith.constant 0 : index
    %c0_5 = arith.constant 0 : index
    %5 = vector.load %arg4[%c0_4, %c0_5] : memref<128x128xbf16, #tpu.memory_space<vmem>>, vector<128x128xbf16>
    %cst = arith.constant dense<0.000000e+00> : vector<8x128xf32>
    %6 = tpu.matmul %4, %5, %cst {dimension_numbers = #tpu.dot_dimension_numbers<[1], [0], [0], [1], [0, 0, 1, 1], [], []>} : vector<8x128xbf16>, vector<128x128xbf16>, vector<8x128xf32> -> vector<8x128xf32>
    %7 = arith.addf %3, %6 : vector<8x128xf32>
    %c0_6 = arith.constant 0 : index
    %c0_7 = arith.constant 0 : index
    %8 = vector.load %arg6[%c0_6, %c0_7] : memref<8x128xf32, #tpu.memory_space<vmem>>, vector<8x128xf32>
    tpu.vector_store %arg6[%c0_6, %c0_7], %7 {strides = array<i32>} : memref<8x128xf32, #tpu.memory_space<vmem>>, vector<8x128xf32>,
    %c0_i32_8 = arith.constant 0 : i32
    %9 = arith.cmpi eq, %arg2, %c0_i32_8 : i32
    %10 = arith.extui %9 : i1 to i32
    %c0_i32_9 = arith.constant 0 : i32
    %11 = arith.cmpi ne, %10, %c0_i32_9 : i32
    scf.if %11 {
      %c0_10 = arith.constant 0 : index
      %c0_11 = arith.constant 0 : index
      %12 = vector.load %arg6[%c0_10, %c0_11] : memref<8x128xf32, #tpu.memory_space<vmem>>, vector<8x128xf32>
      %c0_12 = arith.constant 0 : index
      %c0_13 = arith.constant 0 : index
      %13 = vector.load %arg5[%c0_12, %c0_13] : memref<1x128xf32, #tpu.memory_space<vmem>>, vector<1x128xf32>
      %14 = vector.broadcast %13 : vector<1x128xf32> to vector<8x128xf32>
      %15 = arith.addf %12, %14 : vector<8x128xf32>
      %cst_14 = arith.constant 0.000000e+00 : f32
      %16 = vector.broadcast %cst_14 : f32 to vector<8x128xf32>
      %17 = arith.subf %16, %15 : vector<8x128xf32>
      %18 = math.exp %17 : vector<8x128xf32>
      %cst_15 = arith.constant 1.000000e+00 : f32
      %19 = vector.broadcast %cst_15 : f32 to vector<8x128xf32>
      %20 = arith.addf %19, %18 : vector<8x128xf32>
      %cst_16 = arith.constant 1.000000e+00 : f32
      %21 = vector.broadcast %cst_16 : f32 to vector<8x128xf32>
      %22 = arith.divf %21, %20 : vector<8x128xf32>
      %c0_17 = arith.constant 0 : index
      %c0_18 = arith.constant 0 : index
      %23 = vector.load %arg6[%c0_17, %c0_18] : memref<8x128xf32, #tpu.memory_space<vmem>>, vector<8x128xf32>
      tpu.vector_store %arg6[%c0_17, %c0_18], %22 {strides = array<i32>} : memref<8x128xf32, #tpu.memory_space<vmem>>, vector<8x128xf32>,
    } else {
    }
    return
  }
  func.func @transform_0(%arg0: i32, %arg1: i32, %arg2: i32) -> (i32, i32) {
    %c0_i32 = arith.constant 0 : i32
    return %arg0, %arg2 : i32, i32
  }
  func.func @transform_1(%arg0: i32, %arg1: i32, %arg2: i32) -> (i32, i32) {
    %c0_i32 = arith.constant 0 : i32
    return %arg2, %arg1 : i32, i32
  }
  func.func @transform_2(%arg0: i32, %arg1: i32, %arg2: i32) -> (i32, i32) {
    %c0_i32 = arith.constant 0 : i32
    %c0_i32_0 = arith.constant 0 : i32
    return %c0_i32, %arg1 : i32, i32
  }
  func.func @transform_3(%arg0: i32, %arg1: i32, %arg2: i32) -> (i32, i32) {
    %c0_i32 = arith.constant 0 : i32
    return %arg0, %arg1 : i32, i32
  }
}

</mosaic_0001>

<llo_original>
// kernel: _forward.1
$region0: #{_forward.1}
  #allocation0 [shape = 'u32[]', space=smem, size = 0x4, offset = 0x4, fixed_abs, tag = 'smem constant byte address 0x4 - core index']
  #allocation1 [shape = 'u32[144,128]{1,0:T(1,128)}', space=vmem, size = 0x12000, scoped, tag = 'internal scratch']
  %s0 = inlined_call_operand.vmem [shape: bf16[8,128], index: 0, kind: input, shape index: {}]
  %s1 = inlined_call_operand.hbm [shape: bf16[128,128], index: 1, kind: input, shape index: {}]
  %s2 = inlined_call_operand.vmem [shape: f32[1,128], index: 2, kind: input, shape index: {}]
  %s3 = inlined_call_operand.vmem [shape: f32[8,128], index: 3, kind: output, shape index: {}]
  %s4 = sld [smem:[#allocation0]]
  $region34: #{_forward.1} parent=0
    _
  %s6 = ssub.s32 1, %s4
  %s7 = scalar_select 0, %s6, %s4
  $region1: #{_forward.1} parent=0
    #allocation2 [shape = 'u8[32768]{0}', space=vmem, size = 0x8000, scoped, tag = 'input window, operand 1, single buffered']
    #allocation3 [shape = 's32[1]{0}', space=sflag, size = 0x4, scoped, tag = 'scoped memory for _forward.1']
    %8 = vsyncpa [#allocation3], 0
    // Predicated region
    $region2: #{_forward.1} parent=1 // pred_check
      _
    $region3: #{_forward.1} parent=1 // pred_check_branch
      %10 = sbr.rel (0) target = $region5
    $region4: #{_forward.1} parent=1 // pred_region
      _
    $region5: #{_forward.1} parent=1 // pred_fallthru
      _
    // Predicated region
    $region6: #{_forward.1} parent=1 // pred_check
      _
    $region7: #{_forward.1} parent=1 // pred_check_branch
      %12 = sbr.rel (0) target = $region9
    $region8: #{_forward.1} parent=1 // pred_region
      %s14 = ssub.s32 1024, 1024
      %15 = vsyncadd [#allocation3], %s14
      %s16 = sshll.u32 [#allocation2], 4
      %s17 = int_to_ptr.vmem [resolvable:$true] %s16
      %22 = dma.hbm_to_vmem [thread:$0]  %s1, 1024, %s17, [#allocation3], 64, 64, 4
    $region9: #{_forward.1} parent=1 // pred_fallthru
      _
    // Predicated region
    $region10: #{_forward.1} parent=1 // pred_check
      _
    $region11: #{_forward.1} parent=1 // pred_check_branch
      %24 = sbr.rel (0) target = $region13
    $region12: #{_forward.1} parent=1 // pred_region
      _
    $region13: #{_forward.1} parent=1 // pred_fallthru
      _
    // Predicated region
    $region14: #{_forward.1} parent=1 // pred_check
      _
    $region15: #{_forward.1} parent=1 // pred_check_branch
      %26 = sbr.rel (0) target = $region17
    $region16: #{_forward.1} parent=1 // pred_region
      %27 = dma.done [#allocation3], 1024
    $region17: #{_forward.1} parent=1 // pred_fallthru
      _
    %p29 = scmp.eq.s32.totalorder 0, 0
    // Predicated region
    $region18: #{_forward.1} parent=1 // pred_check
      %p30 = pneg %p29
    $region19: #{_forward.1} parent=1 // pred_check_branch
      %32 = sbr.rel (%p30) target = $region21
    $region20: #{_forward.1} parent=1 // pred_region
      %33 = vst [vmem:[%s3] sm:$0xff] 0.0
    $region21: #{_forward.1} parent=1 // pred_fallthru
      _
    %v34 = vld [vmem:[%s3] sm:$0xff]
    %v35 = vld [vmem:[%s0] sm:$0xf]
    %v36 = vld [vmem:[#allocation2] sm:$0xf]
    %v37 = vld [vmem:[#allocation2 + $0x4] sm:$0xf]
    %v38 = vld [vmem:[#allocation2 + $0x8] sm:$0xf]
    %v39 = vld [vmem:[#allocation2 + $0xc] sm:$0xf]
    %v40 = vld [vmem:[#allocation2 + $0x10] sm:$0xf]
    %v41 = vld [vmem:[#allocation2 + $0x14] sm:$0xf]
    %v42 = vld [vmem:[#allocation2 + $0x18] sm:$0xf]
    %v43 = vld [vmem:[#allocation2 + $0x1c] sm:$0xf]
    %v44 = vld [vmem:[#allocation2 + $0x20] sm:$0xf]
    %v45 = vld [vmem:[#allocation2 + $0x24] sm:$0xf]
    %v46 = vld [vmem:[#allocation2 + $0x28] sm:$0xf]
    %v47 = vld [vmem:[#allocation2 + $0x2c] sm:$0xf]
    %v48 = vld [vmem:[#allocation2 + $0x30] sm:$0xf]
    %v49 = vld [vmem:[#allocation2 + $0x34] sm:$0xf]
    %v50 = vld [vmem:[#allocation2 + $0x38] sm:$0xf]
    %v51 = vld [vmem:[#allocation2 + $0x3c] sm:$0xf]
    %v68 = vunpack.c.l.b16 %v36
    %v69 = vunpack.c.l.b16 %v37
    %v70 = vunpack.c.l.b16 %v38
    %v71 = vunpack.c.l.b16 %v39
    %v72 = vunpack.c.l.b16 %v40
    %v73 = vunpack.c.l.b16 %v41
    %v74 = vunpack.c.l.b16 %v42
    %v75 = vunpack.c.l.b16 %v43
    %v76 = vunpack.c.l.b16 %v44
    %v77 = vunpack.c.l.b16 %v45
    %v78 = vunpack.c.l.b16 %v46
    %v79 = vunpack.c.l.b16 %v47
    %v80 = vunpack.c.l.b16 %v48
    %v81 = vunpack.c.l.b16 %v49
    %v82 = vunpack.c.l.b16 %v50
    %v83 = vunpack.c.l.b16 %v51
    %v84 = vpack.c.b16 %v69, %v68
    %v85 = vpack.c.b16 %v71, %v70
    %v86 = vpack.c.b16 %v73, %v72
    %v87 = vpack.c.b16 %v75, %v74
    %v88 = vpack.c.b16 %v77, %v76
    %v89 = vpack.c.b16 %v79, %v78
    %v90 = vpack.c.b16 %v81, %v80
    %v91 = vpack.c.b16 %v83, %v82
    %100 = vmatprep.subr.bf16.mxu0 0
    %101 = vmatpush1.bf16.msra.mxu0 %v91
    %102 = vmatprep.subr.bf16.mxu0 0
    %103 = vmatpush1.bf16.msra.mxu0 %v90
    %104 = vmatprep.subr.bf16.mxu0 0
    %105 = vmatpush1.bf16.msra.mxu0 %v89
    %106 = vmatprep.subr.bf16.mxu0 0
    %107 = vmatpush1.bf16.msra.mxu0 %v88
    %108 = vmatprep.subr.bf16.mxu0 0
    %109 = vmatpush1.bf16.msra.mxu0 %v87
    %110 = vmatprep.subr.bf16.mxu0 0
    %111 = vmatpush1.bf16.msra.mxu0 %v86
    %112 = vmatprep.subr.bf16.mxu0 0
    %113 = vmatpush1.bf16.msra.mxu0 %v85
    %114 = vmatprep.subr.bf16.mxu0 0
    %115 = vmatpush1.bf16.msra.mxu0 %v84
    %116 = vmatprep.subr.bf16.mxu0 0
    %117 = vmatpush2.bf16.msra.mxu0 0
    %118 = vmatprep.subr.bf16.mxu0 0
    %119 = vmatpush2.bf16.msra.mxu0 0
    %120 = vmatprep.subr.bf16.mxu0 0
    %121 = vmatpush2.bf16.msra.mxu0 0
    %122 = vmatprep.subr.bf16.mxu0 0
    %123 = vmatpush2.bf16.msra.mxu0 0
    %124 = vmatprep.subr.bf16.mxu0 0
    %125 = vmatpush2.bf16.msra.mxu0 0
    %126 = vmatprep.subr.bf16.mxu0 0
    %127 = vmatpush2.bf16.msra.mxu0 0
    %128 = vmatprep.subr.bf16.mxu0 0
    %129 = vmatpush2.bf16.msra.mxu0 0
    %130 = vmatprep.subr.bf16.mxu0 0
    %131 = vmatpush2.bf16.msra.mxu0 0
    %132 = vmatprep.mubr.bf16.mxu0 0
    %133 = vmatmul.mubr.bf16.gmra.mxu0 %v35
    %v134 = vpop.f32.mrf.mxu0
    %v135 = vadd.f32 0.0, %v134
    %v136 = vpop.f32.mrf.mxu0
    %v137 = vpop.f32.mrf.mxu0
    %v138 = vpop.f32.mrf.mxu0
    %139 = vdwg.mxu0
    %v140 = vadd.f32 %v34, %v135
    %141 = vst [vmem:[%s3] sm:$0xff] %v140
    // Predicated region
    $region22: #{_forward.1} parent=1 // pred_check
      %p142 = pneg %p29
    $region23: #{_forward.1} parent=1 // pred_check_branch
      %144 = sbr.rel (%p142) target = $region25
    $region24: #{_forward.1} parent=1 // pred_region
      %v145 = vld [vmem:[%s3] sm:$0xff]
      %v146 = vld [vmem:[%s2] sm:$0x1]
      %v148 = vlaneseq
      %v149 = vshrl.u32 %v148, 7
      %v150 = vsub.s32 0, %v149
      %v151 = vrot.slane %v146, %v150
      %v153 = vadd.f32 %v145, %v151
      %v154 = vsub.f32 0.0, %v153
      %v155 = vmul.f32 %v154, 1.442695
      %v156 = vpow.pop %v155
      %v157 = vadd.f32 %v156, 1.0
      %v158 = vrcp.pop %v157
      %v159 = vmul.f32 1.0, %v158
      %160 = vst [vmem:[%s3] sm:$0xff] %v159
    $region25: #{_forward.1} parent=1 // pred_fallthru
      _
    // Predicated region
    $region26: #{_forward.1} parent=1 // pred_check
      _
    $region27: #{_forward.1} parent=1 // pred_check_branch
      %162 = sbr.rel (0) target = $region29
    $region28: #{_forward.1} parent=1 // pred_region
      _
    $region29: #{_forward.1} parent=1 // pred_fallthru
      _
    // Predicated region
    $region30: #{_forward.1} parent=1 // pred_check
      _
    $region31: #{_forward.1} parent=1 // pred_check_branch
      %164 = sbr.rel (0) target = $region33
    $region32: #{_forward.1} parent=1 // pred_region
      _
    $region33: #{_forward.1} parent=1 // pred_fallthru
      _
    %165 = vsyncpa [#allocation3], 1

</llo_original>
